<compile_context>
chip_gen: v7x
topology: tpu7x:2x2x1
jax: 0.10.0
libtpu: 0.0.40
codegen_flags: <defaults>
</compile_context>

<pallas_src>
import functools

import jax
import jax.numpy as jnp
from jax.experimental import pallas as pl
from jax.experimental.pallas import tpu as pltpu

_LANE = 128
_NEG_BIG = jnp.float32(-1e30)   # behaves like -inf for softmax, no NaN risk
_TB_MAX = 4096                  # batch rows per grid step (fits v5e's 16MiB scoped VMEM)


def net_kernel(x_ref, w1_ref, b1_ref, w2p_ref, b2p_ref, out_ref):
    num_actions = out_ref.shape[-1]
    # fc1 + ReLU: (TB, num_inputs) @ (num_inputs, hidden) + (1, hidden)
    h = jnp.dot(x_ref[...], w1_ref[...], preferred_element_type=jnp.float32)
    h = jnp.maximum(h + b1_ref[...], 0.0)
    # fc2 on lane-padded weights: (TB, hidden) @ (hidden, PAD) + (1, PAD).
    # Padded columns have zero weights and a -1e30 bias -> softmax prob 0,
    # so they do not perturb the real columns' normalization.
    s = jnp.dot(h, w2p_ref[...], preferred_element_type=jnp.float32) + b2p_ref[...]
    # Row-wise softmax with exact normalization (rows sum to 1 in f32).
    s = s - jnp.max(s, axis=-1, keepdims=True)
    e = jnp.exp(s)
    denom = jnp.sum(e, axis=-1, keepdims=True)
    probs = e / denom
    # Store only the real action columns (unpadded HBM output).
    out_ref[...] = probs[:, :num_actions].astype(out_ref.dtype)


def _round_up(n, m):
    return ((n + m - 1) // m) * m


def pad_fc2(w2, b2):
    """One-time lane padding of fc2 params (hoisted off the hot forward path)."""
    hidden, num_actions = w2.shape
    pad_a = _round_up(num_actions, _LANE)
    w2p = jnp.zeros((hidden, pad_a), jnp.float32).at[:, :num_actions].set(w2)
    b2p = jnp.full((1, pad_a), _NEG_BIG, jnp.float32).at[:, :num_actions].set(b2)
    return w2p, b2p


@functools.partial(jax.jit, static_argnames=("num_actions",))
def net_forward(x, w1, b1, w2p, b2p, *, num_actions):
    B, num_inputs = x.shape
    hidden = w1.shape[1]
    pad_a = w2p.shape[1]

    # Single grid step for B <= _TB_MAX (full-dim blocks waive the (8,128)
    # divisibility rule); otherwise tile the batch in chunks of _TB_MAX
    # (multiple of 8, partial last tile handled by Pallas).
    TB = B if B <= _TB_MAX else _TB_MAX
    grid = (pl.cdiv(B, TB),)

    return pl.pallas_call(
        net_kernel,
        out_shape=jax.ShapeDtypeStruct((B, num_actions), jnp.float32),
        grid=grid,
        in_specs=[
            pl.BlockSpec((TB, num_inputs), lambda i: (i, 0)),      # x: tiled over batch
            pl.BlockSpec((num_inputs, hidden), lambda i: (0, 0)),  # w1: VMEM-resident
            pl.BlockSpec((1, hidden), lambda i: (0, 0)),           # b1: VMEM-resident
            pl.BlockSpec((hidden, pad_a), lambda i: (0, 0)),       # w2 (lane-padded)
            pl.BlockSpec((1, pad_a), lambda i: (0, 0)),            # b2 (lane-padded)
        ],
        out_specs=pl.BlockSpec((TB, num_actions), lambda i: (i, 0)),
        compiler_params=pltpu.CompilerParams(
            # TODO(synk): on v7x, confirm the batch grid axis really shards
            # across both TensorCores; if not, switch to an explicit 2-way split.
            dimension_semantics=("parallel",),
        ),
    )(x, w1, b1, w2p, b2p)


def init_params(key, num_inputs, hidden_size, num_actions):
    """Deterministic init mimicking PyTorch nn.Linear default (uniform +-1/sqrt(fan_in))."""
    k1, k2, k3, k4 = jax.random.split(key, 4)
    bound1 = 1.0 / jnp.sqrt(num_inputs)
    bound2 = 1.0 / jnp.sqrt(hidden_size)
    # Stored as (in, out): transpose of PyTorch's (out, in) weight layout.
    w1 = jax.random.uniform(k1, (num_inputs, hidden_size), jnp.float32, -bound1, bound1)
    b1 = jax.random.uniform(k2, (1, hidden_size), jnp.float32, -bound1, bound1)
    w2 = jax.random.uniform(k3, (hidden_size, num_actions), jnp.float32, -bound2, bound2)
    b2 = jax.random.uniform(k4, (1, num_actions), jnp.float32, -bound2, bound2)
    return w1, b1, w2, b2


def reference(x, w1, b1, w2, b2):
    h = jnp.maximum(x @ w1 + b1, 0.0)
    return jax.nn.softmax(h @ w2 + b2, axis=-1)


if __name__ == "__main__":
    num_inputs, hidden_size, num_actions = 4, 32, 2

    key = jax.random.PRNGKey(0)
    kx_small, kx_big, kx_multi, kp = jax.random.split(key, 4)
    w1, b1, w2, b2 = init_params(kp, num_inputs, hidden_size, num_actions)

    # fc2 lane padding done ONCE here, not inside the per-call forward.
    w2p, b2p = pad_fc2(w2, b2)

    # Small shape consistent with a REINFORCE policy net (CartPole-like).
    x_small = jax.random.normal(kx_small, (8, num_inputs), jnp.float32)
    out_small = net_forward(x_small, w1, b1, w2p, b2p, num_actions=num_actions)
    jax.block_until_ready(out_small)

    # Medium batch: single grid step, full-dim (non-multiple-of-8) block.
    x_big = jax.random.normal(kx_big, (1000, num_inputs), jnp.float32)
    out_big = net_forward(x_big, w1, b1, w2p, b2p, num_actions=num_actions)
    jax.block_until_ready(out_big)

    # Batch larger than the tile: exercises 2 grid steps with a partial tail.
    x_multi = jax.random.normal(kx_multi, (_TB_MAX + 4, num_inputs), jnp.float32)
    out_multi = net_forward(x_multi, w1, b1, w2p, b2p, num_actions=num_actions)
    jax.block_until_ready(out_multi)

    # Correctness vs plain-JAX reference.
    for x, out in ((x_small, out_small), (x_big, out_big), (x_multi, out_multi)):
        ref = reference(x, w1, b1, w2, b2)
        assert out.shape == ref.shape
        assert jnp.allclose(out, ref, atol=2e-3, rtol=2e-3), float(jnp.max(jnp.abs(out - ref)))
        # Exact normalization: rows sum to 1 within f32 rounding.
        assert jnp.allclose(jnp.sum(out, axis=-1), 1.0, atol=1e-5)

    print("KERNEL_OK")
</pallas_src>

<mosaic_0001>
module attributes {stable_mosaic.version = 11 : i64} {
  func.func @net_kernel(%arg0: i32, %arg1: memref<8x4xf32, #tpu.memory_space<vmem>>, %arg2: memref<4x32xf32, #tpu.memory_space<vmem>>, %arg3: memref<1x32xf32, #tpu.memory_space<vmem>>, %arg4: memref<32x128xf32, #tpu.memory_space<vmem>>, %arg5: memref<1x128xf32, #tpu.memory_space<vmem>>, %arg6: memref<8x2xf32, #tpu.memory_space<vmem>>) attributes {dimension_semantics = [#tpu.dimension_semantics<parallel>], iteration_bounds = array<i64: 1>, scalar_prefetch = 0 : i64, scratch_operands = 0 : i64, tpu.core_type = #tpu.core_type<tc>, window_params = [{transform_indices = @transform_0, window_bounds = array<i64: 8, 4>}, {pipeline_mode = #tpu.pipeline_mode<synchronous>, transform_indices = @transform_1, window_bounds = array<i64: 4, 32>}, {pipeline_mode = #tpu.pipeline_mode<synchronous>, transform_indices = @transform_2, window_bounds = array<i64: 1, 32>}, {pipeline_mode = #tpu.pipeline_mode<synchronous>, transform_indices = @transform_3, window_bounds = array<i64: 32, 128>}, {pipeline_mode = #tpu.pipeline_mode<synchronous>, transform_indices = @transform_4, window_bounds = array<i64: 1, 128>}, {transform_indices = @transform_5, window_bounds = array<i64: 8, 2>}]} {
    %c0 = arith.constant 0 : index
    %c0_0 = arith.constant 0 : index
    %0 = vector.load %arg1[%c0, %c0_0] : memref<8x4xf32, #tpu.memory_space<vmem>>, vector<8x4xf32>
    %c0_1 = arith.constant 0 : index
    %c0_2 = arith.constant 0 : index
    %1 = vector.load %arg2[%c0_1, %c0_2] : memref<4x32xf32, #tpu.memory_space<vmem>>, vector<4x32xf32>
    %cst = arith.constant dense<0.000000e+00> : vector<8x32xf32>
    %2 = tpu.matmul %0, %1, %cst {dimension_numbers = #tpu.dot_dimension_numbers<[1], [0], [0], [1], [0, 0, 1, 1], [], []>} : vector<8x4xf32>, vector<4x32xf32>, vector<8x32xf32> -> vector<8x32xf32>
    %c0_3 = arith.constant 0 : index
    %c0_4 = arith.constant 0 : index
    %3 = vector.load %arg3[%c0_3, %c0_4] : memref<1x32xf32, #tpu.memory_space<vmem>>, vector<1x32xf32>
    %4 = vector.broadcast %3 : vector<1x32xf32> to vector<8x32xf32>
    %5 = arith.addf %2, %4 : vector<8x32xf32>
    %cst_5 = arith.constant 0.000000e+00 : f32
    %6 = vector.broadcast %cst_5 : f32 to vector<8x32xf32>
    %7 = arith.maximumf %5, %6 : vector<8x32xf32>
    %c0_6 = arith.constant 0 : index
    %c0_7 = arith.constant 0 : index
    %8 = vector.load %arg4[%c0_6, %c0_7] : memref<32x128xf32, #tpu.memory_space<vmem>>, vector<32x128xf32>
    %cst_8 = arith.constant dense<0.000000e+00> : vector<8x128xf32>
    %9 = tpu.matmul %7, %8, %cst_8 {dimension_numbers = #tpu.dot_dimension_numbers<[1], [0], [0], [1], [0, 0, 1, 1], [], []>} : vector<8x32xf32>, vector<32x128xf32>, vector<8x128xf32> -> vector<8x128xf32>
    %c0_9 = arith.constant 0 : index
    %c0_10 = arith.constant 0 : index
    %10 = vector.load %arg5[%c0_9, %c0_10] : memref<1x128xf32, #tpu.memory_space<vmem>>, vector<1x128xf32>
    %11 = vector.broadcast %10 : vector<1x128xf32> to vector<8x128xf32>
    %12 = arith.addf %9, %11 : vector<8x128xf32>
    %cst_11 = arith.constant dense<0xFF800000> : vector<8xf32>
    %13 = vector.multi_reduction <maximumf>, %12, %cst_11 [1] : vector<8x128xf32> to vector<8xf32>
    %14 = vector.shape_cast %13 : vector<8xf32> to vector<8x1xf32>
    %15 = vector.broadcast %14 : vector<8x1xf32> to vector<8x128xf32>
    %16 = arith.subf %12, %15 : vector<8x128xf32>
    %17 = math.exp %16 : vector<8x128xf32>
    %cst_12 = arith.constant dense<0.000000e+00> : vector<8xf32>
    %18 = vector.multi_reduction <add>, %17, %cst_12 [1] : vector<8x128xf32> to vector<8xf32>
    %19 = vector.shape_cast %18 : vector<8xf32> to vector<8x1xf32>
    %20 = vector.broadcast %19 : vector<8x1xf32> to vector<8x128xf32>
    %21 = arith.divf %17, %20 : vector<8x128xf32>
    %22 = vector.extract_strided_slice %21 {offsets = [0, 0], sizes = [8, 2], strides = [1, 1]} : vector<8x128xf32> to vector<8x2xf32>
    %c0_13 = arith.constant 0 : index
    %c0_14 = arith.constant 0 : index
    %23 = vector.load %arg6[%c0_13, %c0_14] : memref<8x2xf32, #tpu.memory_space<vmem>>, vector<8x2xf32>
    tpu.vector_store %arg6[%c0_13, %c0_14], %22 {strides = array<i32>} : memref<8x2xf32, #tpu.memory_space<vmem>>, vector<8x2xf32>,
    return
  }
  func.func @transform_0(%arg0: i32) -> (i32, i32) {
    %c0_i32 = arith.constant 0 : i32
    %c0_i32_0 = arith.constant 0 : i32
    return %arg0, %c0_i32 : i32, i32
  }
  func.func @transform_1(%arg0: i32) -> (i32, i32) {
    %c0_i32 = arith.constant 0 : i32
    %c0_i32_0 = arith.constant 0 : i32
    %c0_i32_1 = arith.constant 0 : i32
    return %c0_i32, %c0_i32_0 : i32, i32
  }
  func.func @transform_2(%arg0: i32) -> (i32, i32) {
    %c0_i32 = arith.constant 0 : i32
    %c0_i32_0 = arith.constant 0 : i32
    %c0_i32_1 = arith.constant 0 : i32
    return %c0_i32, %c0_i32_0 : i32, i32
  }
  func.func @transform_3(%arg0: i32) -> (i32, i32) {
    %c0_i32 = arith.constant 0 : i32
    %c0_i32_0 = arith.constant 0 : i32
    %c0_i32_1 = arith.constant 0 : i32
    return %c0_i32, %c0_i32_0 : i32, i32
  }
  func.func @transform_4(%arg0: i32) -> (i32, i32) {
    %c0_i32 = arith.constant 0 : i32
    %c0_i32_0 = arith.constant 0 : i32
    %c0_i32_1 = arith.constant 0 : i32
    return %c0_i32, %c0_i32_0 : i32, i32
  }
  func.func @transform_5(%arg0: i32) -> (i32, i32) {
    %c0_i32 = arith.constant 0 : i32
    %c0_i32_0 = arith.constant 0 : i32
    return %arg0, %c0_i32 : i32, i32
  }
}

</mosaic_0001>

<llo_original>
// kernel: net_forward.1
$region0: #{net_forward.1}
  #allocation0 [shape = 'u32[]', space=smem, size = 0x4, offset = 0x4, fixed_abs, tag = 'smem constant byte address 0x4 - core index']
  #allocation1 [shape = 'u32[144,128]{1,0:T(1,128)}', space=vmem, size = 0x12000, scoped, tag = 'internal scratch']
  %s0 = inlined_call_operand.vmem [shape: f32[8,4], index: 0, kind: input, shape index: {}]
  %s1 = inlined_call_operand.vmem [shape: f32[4,32], index: 1, kind: input, shape index: {}]
  %s2 = inlined_call_operand.vmem [shape: f32[1,32], index: 2, kind: input, shape index: {}]
  %s3 = inlined_call_operand.hbm [shape: f32[32,128], index: 3, kind: input, shape index: {}]
  %s4 = inlined_call_operand.vmem [shape: f32[1,128], index: 4, kind: input, shape index: {}]
  %s5 = inlined_call_operand.vmem [shape: f32[8,2], index: 5, kind: output, shape index: {}]
  %s6 = sld [smem:[#allocation0]]
  $region34: #{net_forward.1} parent=0
    _
  %s8 = ssub.s32 1, %s6
  %s9 = scalar_select 0, %s8, %s6
  $region1: #{net_forward.1} parent=0
    #allocation2 [shape = 'u8[16384]{0}', space=vmem, size = 0x4000, scoped, tag = 'input window, operand 3, single buffered']
    #allocation3 [shape = 's32[1]{0}', space=sflag, size = 0x4, scoped, tag = 'scoped memory for net_forward.1']
    %10 = vsyncpa [#allocation3], 0
    // Predicated region
    $region2: #{net_forward.1} parent=1 // pred_check
      _
    $region3: #{net_forward.1} parent=1 // pred_check_branch
      %12 = sbr.rel (0) target = $region5
    $region4: #{net_forward.1} parent=1 // pred_region
      _
    $region5: #{net_forward.1} parent=1 // pred_fallthru
      _
    // Predicated region
    $region6: #{net_forward.1} parent=1 // pred_check
      _
    $region7: #{net_forward.1} parent=1 // pred_check_branch
      %14 = sbr.rel (0) target = $region9
    $region8: #{net_forward.1} parent=1 // pred_region
      _
    $region9: #{net_forward.1} parent=1 // pred_fallthru
      _
    // Predicated region
    $region10: #{net_forward.1} parent=1 // pred_check
      _
    $region11: #{net_forward.1} parent=1 // pred_check_branch
      %16 = sbr.rel (0) target = $region13
    $region12: #{net_forward.1} parent=1 // pred_region
      _
    $region13: #{net_forward.1} parent=1 // pred_fallthru
      _
    // Predicated region
    $region14: #{net_forward.1} parent=1 // pred_check
      _
    $region15: #{net_forward.1} parent=1 // pred_check_branch
      %18 = sbr.rel (0) target = $region17
    $region16: #{net_forward.1} parent=1 // pred_region
      %s20 = ssub.s32 512, 512
      %21 = vsyncadd [#allocation3], %s20
      %s22 = sshll.u32 [#allocation2], 4
      %s23 = int_to_ptr.vmem [resolvable:$true] %s22
      %28 = dma.hbm_to_vmem [thread:$0]  %s3, 512, %s23, [#allocation3], 128, 128, 8
    $region17: #{net_forward.1} parent=1 // pred_fallthru
      _
    // Predicated region
    $region18: #{net_forward.1} parent=1 // pred_check
      _
    $region19: #{net_forward.1} parent=1 // pred_check_branch
      %30 = sbr.rel (0) target = $region21
    $region20: #{net_forward.1} parent=1 // pred_region
      _
    $region21: #{net_forward.1} parent=1 // pred_fallthru
      _
    // Predicated region
    $region22: #{net_forward.1} parent=1 // pred_check
      _
    $region23: #{net_forward.1} parent=1 // pred_check_branch
      %32 = sbr.rel (0) target = $region25
    $region24: #{net_forward.1} parent=1 // pred_region
      %33 = dma.done [#allocation3], 512
    $region25: #{net_forward.1} parent=1 // pred_fallthru
      _
    %v34 = vld [vmem:[%s0] sm:$0xff]
    %v35 = vld [vmem:[%s1] sm:$0xf]
    %v36 = vld [vmem:[%s2] sm:$0x1]
    %v38 = vlaneseq
    %v39 = vshrl.u32 %v38, 7
    %v40 = vsub.s32 0, %v39
    %v41 = vrot.slane %v36, %v40
    %vm43 = vcmask 31744
    %v45 = vsel %vm43, %v34, 0
    %vm47 = vcmask 1043456
    %v49 = vsel %vm47, %v35, 0
    %51 = vmatprep.subr.mxu0 0.0
    %52 = vmatpush1.msra.mxu0 %v49
    %53 = vmatprep.subr.mxu0 0.0
    %54 = vmatpush1.msra.mxu0 0.0
    %55 = vmatprep.subr.mxu0 0.0
    %56 = vmatpush1.msra.mxu0 0.0
    %57 = vmatprep.subr.mxu0 0.0
    %58 = vmatpush1.msra.mxu0 0.0
    %59 = vmatprep.subr.mxu0 0.0
    %60 = vmatpush1.msra.mxu0 0.0
    %61 = vmatprep.subr.mxu0 0.0
    %62 = vmatpush1.msra.mxu0 0.0
    %63 = vmatprep.subr.mxu0 0.0
    %64 = vmatpush1.msra.mxu0 0.0
    %65 = vmatprep.subr.mxu0 0.0
    %66 = vmatpush1.msra.mxu0 0.0
    %67 = vmatprep.subr.mxu0 0.0
    %68 = vmatpush1.msra.mxu0 0.0
    %69 = vmatprep.subr.mxu0 0.0
    %70 = vmatpush1.msra.mxu0 0.0
    %71 = vmatprep.subr.mxu0 0.0
    %72 = vmatpush1.msra.mxu0 0.0
    %73 = vmatprep.subr.mxu0 0.0
    %74 = vmatpush1.msra.mxu0 0.0
    %75 = vmatprep.subr.mxu0 0.0
    %76 = vmatpush1.msra.mxu0 0.0
    %77 = vmatprep.subr.mxu0 0.0
    %78 = vmatpush1.msra.mxu0 0.0
    %79 = vmatprep.subr.mxu0 0.0
    %80 = vmatpush1.msra.mxu0 0.0
    %81 = vmatprep.subr.mxu0 0.0
    %82 = vmatpush1.msra.mxu0 0.0
    %83 = vmatprep.subr.mxu0 0.0
    %84 = vmatpush1.msra.mxu0 0.0
    %85 = vmatprep.subr.mxu0 0.0
    %86 = vmatpush1.msra.mxu0 0.0
    %87 = vmatprep.subr.mxu0 0.0
    %88 = vmatpush1.msra.mxu0 0.0
    %89 = vmatprep.subr.mxu0 0.0
    %90 = vmatpush1.msra.mxu0 0.0
    %91 = vmatprep.subr.mxu0 0.0
    %92 = vmatpush1.msra.mxu0 0.0
    %93 = vmatprep.subr.mxu0 0.0
    %94 = vmatpush1.msra.mxu0 0.0
    %95 = vmatprep.subr.mxu0 0.0
    %96 = vmatpush1.msra.mxu0 0.0
    %97 = vmatprep.subr.mxu0 0.0
    %98 = vmatpush1.msra.mxu0 0.0
    %99 = vmatprep.subr.mxu0 0.0
    %100 = vmatpush1.msra.mxu0 0.0
    %101 = vmatprep.subr.mxu0 0.0
    %102 = vmatpush1.msra.mxu0 0.0
    %103 = vmatprep.subr.mxu0 0.0
    %104 = vmatpush1.msra.mxu0 0.0
    %105 = vmatprep.subr.mxu0 0.0
    %106 = vmatpush1.msra.mxu0 0.0
    %107 = vmatprep.subr.mxu0 0.0
    %108 = vmatpush1.msra.mxu0 0.0
    %109 = vmatprep.subr.mxu0 0.0
    %110 = vmatpush1.msra.mxu0 0.0
    %111 = vmatprep.subr.mxu0 0.0
    %112 = vmatpush1.msra.mxu0 0.0
    %113 = vmatprep.subr.mxu0 0.0
    %114 = vmatpush1.msra.mxu0 0.0
    %115 = vmatprep.mubr.f32.mxu0 0.0
    %116 = vmatmul.mubr.f32.gmra.mrb[0].mxu0 %v45
    %v117 = vpop.f32.mrb[0].mxu0
    %v118 = vadd.f32 %v41, %v117
    %v119 = vpop.f32.mrb[0].mxu0
    %120 = vdwg.mxu0
    %v121 = vmax.f32 %v118, 0.0
    %v122 = vld [vmem:[#allocation2] sm:$0xff]
    %v123 = vld [vmem:[#allocation2 + $0x8] sm:$0xff]
    %v124 = vld [vmem:[#allocation2 + $0x10] sm:$0xff]
    %v125 = vld [vmem:[#allocation2 + $0x18] sm:$0xff]
    %v126 = vld [vmem:[%s4] sm:$0x1]
    %v128 = vlaneseq
    %v129 = vshrl.u32 %v128, 7
    %v130 = vsub.s32 0, %v129
    %v131 = vrot.slane %v126, %v130
    %vm133 = vcmask 261120
    %v135 = vsel %vm133, %v121, 0
    %137 = vmatprep.subr.mxu0 0.0
    %138 = vmatpush1.msra.mxu0 %v122
    %139 = vmatprep.subr.mxu0 0.0
    %140 = vmatpush1.msra.mxu0 %v123
    %141 = vmatprep.subr.mxu0 0.0
    %142 = vmatpush1.msra.mxu0 %v124
    %143 = vmatprep.subr.mxu0 0.0
    %144 = vmatpush1.msra.mxu0 %v125
    %145 = vmatprep.subr.mxu0 0.0
    %146 = vmatpush1.msra.mxu0 0.0
    %147 = vmatprep.subr.mxu0 0.0
    %148 = vmatpush1.msra.mxu0 0.0
    %149 = vmatprep.subr.mxu0 0.0
    %150 = vmatpush1.msra.mxu0 0.0
    %151 = vmatprep.subr.mxu0 0.0
    %152 = vmatpush1.msra.mxu0 0.0
    %153 = vmatprep.subr.mxu0 0.0
    %154 = vmatpush1.msra.mxu0 0.0
    %155 = vmatprep.subr.mxu0 0.0
    %156 = vmatpush1.msra.mxu0 0.0
    %157 = vmatprep.subr.mxu0 0.0
    %158 = vmatpush1.msra.mxu0 0.0
    %159 = vmatprep.subr.mxu0 0.0
    %160 = vmatpush1.msra.mxu0 0.0
    %161 = vmatprep.subr.mxu0 0.0
    %162 = vmatpush1.msra.mxu0 0.0
    %163 = vmatprep.subr.mxu0 0.0
    %164 = vmatpush1.msra.mxu0 0.0
    %165 = vmatprep.subr.mxu0 0.0
    %166 = vmatpush1.msra.mxu0 0.0
    %167 = vmatprep.subr.mxu0 0.0
    %168 = vmatpush1.msra.mxu0 0.0
    %169 = vmatprep.subr.mxu0 0.0
    %170 = vmatpush1.msra.mxu0 0.0
    %171 = vmatprep.subr.mxu0 0.0
    %172 = vmatpush1.msra.mxu0 0.0
    %173 = vmatprep.subr.mxu0 0.0
    %174 = vmatpush1.msra.mxu0 0.0
    %175 = vmatprep.subr.mxu0 0.0
    %176 = vmatpush1.msra.mxu0 0.0
    %177 = vmatprep.subr.mxu0 0.0
    %178 = vmatpush1.msra.mxu0 0.0
    %179 = vmatprep.subr.mxu0 0.0
    %180 = vmatpush1.msra.mxu0 0.0
    %181 = vmatprep.subr.mxu0 0.0
    %182 = vmatpush1.msra.mxu0 0.0
    %183 = vmatprep.subr.mxu0 0.0
    %184 = vmatpush1.msra.mxu0 0.0
    %185 = vmatprep.subr.mxu0 0.0
    %186 = vmatpush1.msra.mxu0 0.0
    %187 = vmatprep.subr.mxu0 0.0
    %188 = vmatpush1.msra.mxu0 0.0
    %189 = vmatprep.subr.mxu0 0.0
    %190 = vmatpush1.msra.mxu0 0.0
    %191 = vmatprep.subr.mxu0 0.0
    %192 = vmatpush1.msra.mxu0 0.0
    %193 = vmatprep.subr.mxu0 0.0
    %194 = vmatpush1.msra.mxu0 0.0
    %195 = vmatprep.subr.mxu0 0.0
    %196 = vmatpush1.msra.mxu0 0.0
    %197 = vmatprep.subr.mxu0 0.0
    %198 = vmatpush1.msra.mxu0 0.0
    %199 = vmatprep.subr.mxu0 0.0
    %200 = vmatpush1.msra.mxu0 0.0
    %201 = vmatprep.mubr.f32.mxu0 0.0
    %202 = vmatmul.mubr.f32.gmra.mrb[0].mxu0 %v135
    %v203 = vpop.f32.mrb[0].mxu0
    %v204 = vadd.f32 %v131, %v203
    %v205 = vpop.f32.mrb[0].mxu0
    %206 = vdwg.mxu0
    %207 = vmax.xlane.f32.xlu0 %v204
    %v208 = vpop.xlane.xlu0 %207
    %v209 = vsub.f32 %v204, %v208
    %v210 = vmul.f32 %v209, 1.442695
    %v211 = vpow.pop %v210
    %212 = vadd.xlane.f32.xlu0 %v211
    %v213 = vpop.xlane.xlu0 %212
    %v214 = vrcp.pop %v213
    %v215 = vmul.f32 %v211, %v214
    %vm216 = vcmask 15360
    %217 = vst.msk [vmem:[%s5] sm:$0xff] %vm216, %v215
    // Predicated region
    $region26: #{net_forward.1} parent=1 // pred_check
      _
    $region27: #{net_forward.1} parent=1 // pred_check_branch
      %219 = sbr.rel (0) target = $region29
    $region28: #{net_forward.1} parent=1 // pred_region
      _
    $region29: #{net_forward.1} parent=1 // pred_fallthru
      _
    // Predicated region
    $region30: #{net_forward.1} parent=1 // pred_check
      _
    $region31: #{net_forward.1} parent=1 // pred_check_branch
      %221 = sbr.rel (0) target = $region33
    $region32: #{net_forward.1} parent=1 // pred_region
      _
    $region33: #{net_forward.1} parent=1 // pred_fallthru
      _
    %222 = vsyncpa [#allocation3], 1

</llo_original>
